<compile_context>
chip_gen: v5e
topology: v5e:2x2
jax: 0.10.0
libtpu: 0.0.40
codegen_flags: <defaults>
</compile_context>

<pallas_src>
import functools

import jax
import jax.numpy as jnp
from jax import lax
from jax.experimental import pallas as pl
from jax.experimental.pallas import tpu as pltpu

LOG_2PI = float(jnp.log(2.0 * jnp.pi))
OUT_LANES = 128  # lane-dense packed output slab: [value, logp, mu(A), action(A), 0...]


def _round_up(x, m):
    return ((x + m - 1) // m) * m


def _ac_kernel(S, A, xz_ref, w1_ref, w2_ref, p_ref, out_ref):
    """Fused actor-critic forward for one batch tile.

    xz_ref : (bB, S+A+1)      = [state | eps | 1]           (matmul dtype)
    w1_ref : (S+A+1, 2H+1)    fused layer-1 [critic | actor]; eps rows are zero,
                              the ones row carries the layer-1 biases, and the
                              last output column is wired so ReLU(h)[:, -1] == 1.
    w2_ref : (2H+1, 128)      layer-2 pre-laid onto the packed output lanes
                              [value | logp_const | mu | mu(dup) | 0...]; its
                              last row is the layer-2 bias (+ logp_const lane 1).
    p_ref  : (S+A+1, 128)     places sigma*eps onto the action lanes.
    out_ref: (bB, 128) f32    packed [value, logp, mu(A), action(A), 0-pad].
    """
    xz = xz_ref[...]

    # ---- layer 1 (critic + actor + ones passthrough fused): ReLU(xz @ W1) ----
    h = jnp.maximum(
        jnp.dot(xz, w1_ref[...], preferred_element_type=jnp.float32), 0.0)

    # ---- layer 2, already laid out over the 128 packed lanes (bias folded) ----
    y = jnp.dot(h.astype(w2_ref.dtype), w2_ref[...],
                preferred_element_type=jnp.float32)              # (bB, 128)

    # tanh on the actor lanes (>= 2); value (0) / logp (1) lanes untouched;
    # trailing zero lanes stay zero since tanh(0) == 0.
    lane = lax.broadcasted_iota(jnp.int32, (1, out_ref.shape[1]), 1)
    y = jnp.where(lane >= 2, jnp.tanh(y), y)

    # sigma*eps dropped onto the action lanes via one tiny MXU op (0 elsewhere).
    addend = jnp.dot(xz, p_ref[...], preferred_element_type=jnp.float32)

    # log_prob of the freshly sampled action: since action - mu == sigma*eps,
    # the quadratic term is exactly -0.5*eps^2; the constant already sits in
    # lane 1 of y (from w2's bias row).
    eps = xz_ref[:, S:S + A].astype(jnp.float32)
    nh = -0.5 * jnp.sum(eps * eps, axis=-1, keepdims=True)       # (bB, 1)

    out_ref[...] = y + addend + jnp.where(lane == 1, nh, 0.0)


def prepare_params(params, *, matmul_dtype=jnp.bfloat16):
    """One-time fusion of the PyTorch-style parameters into the packed arrays
    the kernel consumes.  Call once; reuse the result across forward passes."""
    f32 = jnp.float32
    w1c, b1c = params["w1c"].astype(f32), params["b1c"].astype(f32)
    w2c, b2c = params["w2c"].astype(f32), params["b2c"].astype(f32)
    w1a, b1a = params["w1a"].astype(f32), params["b1a"].astype(f32)
    w2a, b2a = params["w2a"].astype(f32), params["b2a"].astype(f32)
    log_std = params["log_std"].astype(f32)                      # (1, A)

    S, H = w1c.shape
    A = w2a.shape[1]
    assert 2 + 2 * A <= OUT_LANES, "action_size too large for the 128-lane slab"

    sigma = jax.nn.softplus(log_std)                             # (1, A)
    log_sigma = jnp.log(sigma)
    logp_const = jnp.sum(-log_sigma - 0.5 * LOG_2PI)             # scalar
    entropy = jnp.sum(0.5 + 0.5 * LOG_2PI + log_sigma)           # scalar

    Sp = S + A + 1          # state | eps | ones
    Hp = 2 * H + 1          # critic hidden | actor hidden | ones passthrough

    # layer-1 weights: [critic | actor | ones-col]; bias folded via the ones row.
    w1 = jnp.zeros((Sp, Hp), f32)
    w1 = w1.at[:S, :H].set(w1c)
    w1 = w1.at[:S, H:2 * H].set(w1a)
    w1 = w1.at[Sp - 1, :H].set(b1c[0])
    w1 = w1.at[Sp - 1, H:2 * H].set(b1a[0])
    w1 = w1.at[Sp - 1, Hp - 1].set(1.0)                          # ReLU(1) == 1

    # layer-2 weights pre-laid over the 128 packed output lanes.
    w2 = jnp.zeros((Hp, OUT_LANES), f32)
    w2 = w2.at[:H, 0:1].set(w2c)                                 # value lane
    w2 = w2.at[H:2 * H, 2:2 + A].set(w2a)                        # mu lanes
    w2 = w2.at[H:2 * H, 2 + A:2 + 2 * A].set(w2a)                # action lanes (pre-tanh mu)
    w2 = w2.at[Hp - 1, 0].set(b2c[0, 0])                         # critic bias
    w2 = w2.at[Hp - 1, 1].set(logp_const)                        # logp constant
    w2 = w2.at[Hp - 1, 2:2 + A].set(b2a[0])
    w2 = w2.at[Hp - 1, 2 + A:2 + 2 * A].set(b2a[0])

    # sigma placement matrix: adds sigma*eps onto the action lanes (post-tanh).
    pmat = jnp.zeros((Sp, OUT_LANES), f32)
    pmat = pmat.at[S + jnp.arange(A), 2 + A + jnp.arange(A)].set(sigma[0])

    return {
        "w1": w1.astype(matmul_dtype),
        "w2": w2.astype(matmul_dtype),
        "pmat": pmat.astype(matmul_dtype),
        "entropy": jnp.reshape(entropy, (1, 1)),
        "S": S, "A": A, "dtype": matmul_dtype,
    }


def actor_critic_forward(state, fused, noise, *, block_b=2048):
    """Fused actor-critic forward pass (single Pallas kernel, sampling path).

    state: (B, S) f32.  noise: (B, A) f32 standard normal (eps for dist.sample()).
    fused: output of prepare_params() (all parameter prep hoisted out of the
    hot path).  Returns a dict matching the PyTorch module's output pytree.
    """
    f32 = jnp.float32
    S, A, md = fused["S"], fused["A"], fused["dtype"]
    B = state.shape[0]
    Sp = S + A + 1

    # single merged lane-dense input: [state | eps | 1]  (one DMA per tile)
    xz = jnp.concatenate(
        [state.astype(f32), noise.astype(f32), jnp.ones((B, 1), f32)],
        axis=1).astype(md)                                       # (B, Sp)

    # batch tile: one tile for small B; >= 2 "parallel" steps for large B so
    # both v7x TensorCores get work.  Pallas masks the partial last tile, so
    # no jnp.pad copies of the inputs are needed.
    block_b = _round_up(max(block_b, 8), 8)
    two_core_min = 512
    if B <= two_core_min:
        bB = B
    else:
        bB = min(block_b, _round_up(pl.cdiv(B, 2), 8))
    grid = (pl.cdiv(B, bB),)

    w1, w2, pmat = fused["w1"], fused["w2"], fused["pmat"]
    Hp = w1.shape[1]
    isz = jnp.dtype(md).itemsize
    cost = pl.CostEstimate(
        flops=2 * B * (Sp * Hp + Hp * OUT_LANES + Sp * OUT_LANES),
        transcendentals=B * OUT_LANES,                           # tanh on the slab
        bytes_accessed=(B * Sp * isz
                        + (Sp * Hp + Hp * OUT_LANES + Sp * OUT_LANES) * isz
                        + B * OUT_LANES * 4),
    )

    packed = pl.pallas_call(
        functools.partial(_ac_kernel, S, A),
        out_shape=jax.ShapeDtypeStruct((B, OUT_LANES), f32),
        grid=grid,
        in_specs=[
            pl.BlockSpec((bB, Sp), lambda i: (i, 0)),            # [state|eps|1] tile
            pl.BlockSpec(w1.shape, lambda i: (0, 0)),            # resident weights
            pl.BlockSpec(w2.shape, lambda i: (0, 0)),
            pl.BlockSpec(pmat.shape, lambda i: (0, 0)),
        ],
        out_specs=pl.BlockSpec((bB, OUT_LANES), lambda i: (i, 0)),
        compiler_params=pltpu.CompilerParams(
            dimension_semantics=("parallel",)),
        cost_estimate=cost,
    )(xz, w1, w2, pmat)

    value = packed[:, 0:1]
    log_prob = packed[:, 1:2]
    mu = packed[:, 2:2 + A]
    action = packed[:, 2 + A:2 + 2 * A]
    entropy = jnp.broadcast_to(fused["entropy"], (B, 1))

    # TODO(synk): the PyTorch forward also accepts a user-provided `action` for
    # log_prob evaluation; only the sampling path (action=None) is implemented.
    return {
        "actions": action[None, ...],   # unsqueeze(0) -> (1, B, A)
        "log_prob": log_prob,           # (B, 1)
        "entropy": entropy,             # (B, 1)
        "mean": mu,                     # (B, A)
        "values": value,                # (B, 1)
    }


def init_params(key, state_size, hidden_size, action_size, std=0.0):
    """Deterministic synthetic init (mimics small-uniform linear init)."""
    ks = jax.random.split(key, 8)
    f32 = jnp.float32

    def lin(kw, kb, fan_in, fan_out):
        bound = 1.0 / jnp.sqrt(fan_in)
        w = jax.random.uniform(kw, (fan_in, fan_out), f32, -bound, bound)
        b = jax.random.uniform(kb, (1, fan_out), f32, -bound, bound)
        return w, b

    w1c, b1c = lin(ks[0], ks[1], state_size, hidden_size)
    w2c, b2c = lin(ks[2], ks[3], hidden_size, 1)
    w1a, b1a = lin(ks[4], ks[5], state_size, hidden_size)
    w2a, b2a = lin(ks[6], ks[7], hidden_size, action_size)
    log_std = jnp.ones((1, action_size), f32) * std

    return {
        "w1c": w1c, "b1c": b1c, "w2c": w2c, "b2c": b2c,
        "w1a": w1a, "b1a": b1a, "w2a": w2a, "b2a": b2a,
        "log_std": log_std,
    }


def ref_forward(state, params, noise):
    """Pure-JAX reference matching the PyTorch module semantics."""
    hp = jax.lax.Precision.HIGHEST
    h_c = jnp.maximum(jnp.dot(state, params["w1c"], precision=hp) + params["b1c"], 0.0)
    value = jnp.dot(h_c, params["w2c"], precision=hp) + params["b2c"]
    h_a = jnp.maximum(jnp.dot(state, params["w1a"], precision=hp) + params["b1a"], 0.0)
    mu = jnp.tanh(jnp.dot(h_a, params["w2a"], precision=hp) + params["b2a"])
    sigma = jax.nn.softplus(params["log_std"])
    log_sigma = jnp.log(sigma)
    action = mu + sigma * noise
    logp = jnp.sum(-((action - mu) ** 2) / (2.0 * sigma * sigma)
                   - log_sigma - 0.5 * LOG_2PI, axis=-1, keepdims=True)
    ent = jnp.broadcast_to(
        jnp.sum(0.5 + 0.5 * LOG_2PI + log_sigma, axis=-1, keepdims=True),
        (state.shape[0], 1))
    return {"actions": action[None, ...], "log_prob": logp, "entropy": ent,
            "mean": mu, "values": value}


if __name__ == "__main__":
    B, S, H, A = 8, 32, 32, 8

    key = jax.random.PRNGKey(0)
    k_params, k_state, k_noise = jax.random.split(key, 3)

    params = init_params(k_params, S, H, A, std=0.0)
    state = jax.random.normal(k_state, (B, S), jnp.float32)
    noise = jax.random.normal(k_noise, (B, A), jnp.float32)   # eps for dist.sample()

    ref = ref_forward(state, params, noise)

    # f32 operands: tight accuracy check vs. the pure-JAX reference.
    fused_f32 = prepare_params(params, matmul_dtype=jnp.float32)
    out = jax.block_until_ready(actor_critic_forward(state, fused_f32, noise))
    for name in ("values", "mean", "actions", "log_prob", "entropy"):
        assert out[name].shape == ref[name].shape, (name, out[name].shape, ref[name].shape)
        assert jnp.allclose(out[name], ref[name], atol=2e-3, rtol=2e-3), name

    # bf16 operands (default: halves input/weight DMA bytes, f32 accumulation).
    fused_bf16 = prepare_params(params)
    out_bf = jax.block_until_ready(actor_critic_forward(state, fused_bf16, noise))
    for name in ("values", "mean", "actions", "log_prob", "entropy"):
        assert jnp.allclose(out_bf[name], ref[name], atol=5e-2, rtol=5e-2), name

    print("KERNEL_OK")
</pallas_src>

<mosaic_0001>
module attributes {stable_mosaic.version = 11 : i64} {
  func.func @_ac_kernel(%arg0: i32, %arg1: memref<8x41xf32, #tpu.memory_space<vmem>>, %arg2: memref<41x65xf32, #tpu.memory_space<vmem>>, %arg3: memref<65x128xf32, #tpu.memory_space<vmem>>, %arg4: memref<41x128xf32, #tpu.memory_space<vmem>>, %arg5: memref<8x128xf32, #tpu.memory_space<vmem>>) attributes {dimension_semantics = [#tpu.dimension_semantics<parallel>], iteration_bounds = array<i64: 1>, scalar_prefetch = 0 : i64, scratch_operands = 0 : i64, tpu.core_type = #tpu.core_type<tc>, window_params = [{transform_indices = @transform_0, window_bounds = array<i64: 8, 41>}, {pipeline_mode = #tpu.pipeline_mode<synchronous>, transform_indices = @transform_1, window_bounds = array<i64: 41, 65>}, {pipeline_mode = #tpu.pipeline_mode<synchronous>, transform_indices = @transform_2, window_bounds = array<i64: 65, 128>}, {pipeline_mode = #tpu.pipeline_mode<synchronous>, transform_indices = @transform_3, window_bounds = array<i64: 41, 128>}, {transform_indices = @transform_4, window_bounds = array<i64: 8, 128>}]} {
    %c0 = arith.constant 0 : index
    %c0_0 = arith.constant 0 : index
    %0 = vector.load %arg1[%c0, %c0_0] : memref<8x41xf32, #tpu.memory_space<vmem>>, vector<8x41xf32>
    %c0_1 = arith.constant 0 : index
    %c0_2 = arith.constant 0 : index
    %1 = vector.load %arg2[%c0_1, %c0_2] : memref<41x65xf32, #tpu.memory_space<vmem>>, vector<41x65xf32>
    %cst = arith.constant dense<0.000000e+00> : vector<8x65xf32>
    %2 = tpu.matmul %0, %1, %cst {dimension_numbers = #tpu.dot_dimension_numbers<[1], [0], [0], [1], [0, 0, 1, 1], [], []>} : vector<8x41xf32>, vector<41x65xf32>, vector<8x65xf32> -> vector<8x65xf32>
    %cst_3 = arith.constant 0.000000e+00 : f32
    %3 = vector.broadcast %cst_3 : f32 to vector<8x65xf32>
    %4 = arith.maximumf %2, %3 : vector<8x65xf32>
    %c0_4 = arith.constant 0 : index
    %c0_5 = arith.constant 0 : index
    %5 = vector.load %arg3[%c0_4, %c0_5] : memref<65x128xf32, #tpu.memory_space<vmem>>, vector<65x128xf32>
    %cst_6 = arith.constant dense<0.000000e+00> : vector<8x128xf32>
    %6 = tpu.matmul %4, %5, %cst_6 {dimension_numbers = #tpu.dot_dimension_numbers<[1], [0], [0], [1], [0, 0, 1, 1], [], []>} : vector<8x65xf32>, vector<65x128xf32>, vector<8x128xf32> -> vector<8x128xf32>
    %7 = tpu.iota {dimensions = array<i32: 1>} : vector<1x128xi32>
    %c2_i32 = arith.constant 2 : i32
    %8 = vector.broadcast %c2_i32 : i32 to vector<1x128xi32>
    %9 = arith.cmpi sge, %7, %8 : vector<1x128xi32>
    %10 = math.tanh %6 : vector<8x128xf32>
    %11 = vector.shape_cast %9 : vector<1x128xi1> to vector<1x128xi1>
    %12 = vector.broadcast %11 : vector<1x128xi1> to vector<8x128xi1>
    %13 = arith.select %12, %10, %6 : vector<8x128xi1>, vector<8x128xf32>
    %c0_7 = arith.constant 0 : index
    %c0_8 = arith.constant 0 : index
    %14 = vector.load %arg4[%c0_7, %c0_8] : memref<41x128xf32, #tpu.memory_space<vmem>>, vector<41x128xf32>
    %cst_9 = arith.constant dense<0.000000e+00> : vector<8x128xf32>
    %15 = tpu.matmul %0, %14, %cst_9 {dimension_numbers = #tpu.dot_dimension_numbers<[1], [0], [0], [1], [0, 0, 1, 1], [], []>} : vector<8x41xf32>, vector<41x128xf32>, vector<8x128xf32> -> vector<8x128xf32>
    %c0_10 = arith.constant 0 : index
    %c32 = arith.constant 32 : index
    %16 = vector.load %arg1[%c0_10, %c32] : memref<8x41xf32, #tpu.memory_space<vmem>>, vector<8x8xf32>
    %17 = arith.mulf %16, %16 : vector<8x8xf32>
    %cst_11 = arith.constant dense<0.000000e+00> : vector<8xf32>
    %18 = vector.multi_reduction <add>, %17, %cst_11 [1] : vector<8x8xf32> to vector<8xf32>
    %19 = vector.shape_cast %18 : vector<8xf32> to vector<8x1xf32>
    %cst_12 = arith.constant -5.000000e-01 : f32
    %20 = vector.broadcast %cst_12 : f32 to vector<8x1xf32>
    %21 = arith.mulf %20, %19 : vector<8x1xf32>
    %22 = arith.addf %13, %15 : vector<8x128xf32>
    %c1_i32 = arith.constant 1 : i32
    %23 = vector.broadcast %c1_i32 : i32 to vector<1x128xi32>
    %24 = arith.cmpi eq, %7, %23 : vector<1x128xi32>
    %cst_13 = arith.constant 0.000000e+00 : f32
    %25 = vector.shape_cast %24 : vector<1x128xi1> to vector<1x128xi1>
    %26 = vector.broadcast %25 : vector<1x128xi1> to vector<8x128xi1>
    %27 = vector.shape_cast %21 : vector<8x1xf32> to vector<8x1xf32>
    %28 = vector.broadcast %27 : vector<8x1xf32> to vector<8x128xf32>
    %29 = vector.broadcast %cst_13 : f32 to vector<8x128xf32>
    %30 = arith.select %26, %28, %29 : vector<8x128xi1>, vector<8x128xf32>
    %31 = arith.addf %22, %30 : vector<8x128xf32>
    %c0_14 = arith.constant 0 : index
    %c0_15 = arith.constant 0 : index
    %32 = vector.load %arg5[%c0_14, %c0_15] : memref<8x128xf32, #tpu.memory_space<vmem>>, vector<8x128xf32>
    tpu.vector_store %arg5[%c0_14, %c0_15], %31 {strides = array<i32>} : memref<8x128xf32, #tpu.memory_space<vmem>>, vector<8x128xf32>,
    return
  }
  func.func @transform_0(%arg0: i32) -> (i32, i32) {
    %c0_i32 = arith.constant 0 : i32
    %c0_i32_0 = arith.constant 0 : i32
    return %arg0, %c0_i32 : i32, i32
  }
  func.func @transform_1(%arg0: i32) -> (i32, i32) {
    %c0_i32 = arith.constant 0 : i32
    %c0_i32_0 = arith.constant 0 : i32
    %c0_i32_1 = arith.constant 0 : i32
    return %c0_i32, %c0_i32_0 : i32, i32
  }
  func.func @transform_2(%arg0: i32) -> (i32, i32) {
    %c0_i32 = arith.constant 0 : i32
    %c0_i32_0 = arith.constant 0 : i32
    %c0_i32_1 = arith.constant 0 : i32
    return %c0_i32, %c0_i32_0 : i32, i32
  }
  func.func @transform_3(%arg0: i32) -> (i32, i32) {
    %c0_i32 = arith.constant 0 : i32
    %c0_i32_0 = arith.constant 0 : i32
    %c0_i32_1 = arith.constant 0 : i32
    return %c0_i32, %c0_i32_0 : i32, i32
  }
  func.func @transform_4(%arg0: i32) -> (i32, i32) {
    %c0_i32 = arith.constant 0 : i32
    %c0_i32_0 = arith.constant 0 : i32
    return %arg0, %c0_i32 : i32, i32
  }
}

</mosaic_0001>

<llo_original>
// kernel: tpu_custom_call.1
$region0: #{tpu_custom_call.1}
  #allocation0 [shape = 'u32[]', space=smem, size = 0x4, offset = 0x4, fixed_abs, tag = 'smem constant byte address 0x4 - core index']
  #allocation1 [shape = 'u32[72,128]{1,0:T(1,128)}', space=vmem, size = 0x9000, scoped, tag = 'internal scratch']
  %s0 = inlined_call_operand.hbm [shape: f32[8,41], index: 0, kind: input, shape index: {}]
  %s1 = inlined_call_operand.hbm [shape: f32[41,65], index: 1, kind: input, shape index: {}]
  %s2 = inlined_call_operand.hbm [shape: f32[65,128], index: 2, kind: input, shape index: {}]
  %s3 = inlined_call_operand.hbm [shape: f32[41,128], index: 3, kind: input, shape index: {}]
  %s4 = inlined_call_operand.hbm [shape: f32[8,128], index: 4, kind: output, shape index: {}]
  %s5 = sld [smem:[#allocation0]]
  $region42: #{tpu_custom_call.1} parent=0
    _
  %s7 = ssub.s32 1, %s5
  %s8 = scalar_select 0, %s7, %s5
  $region1: #{tpu_custom_call.1} parent=0
    #allocation2 [shape = 'u8[4096]{0}', space=vmem, size = 0x1000, scoped, tag = 'input window, operand 0, single buffered']
    #allocation3 [shape = 's32[1]{0}', space=sflag, size = 0x4, scoped, tag = 'scoped memory for tpu_custom_call.1']
    #allocation4 [shape = 's32[1]{0}', space=sflag, size = 0x4, scoped, tag = 'scoped memory for tpu_custom_call.1']
    #allocation5 [shape = 'u8[24576]{0}', space=vmem, size = 0x6000, scoped, tag = 'input window, operand 1, single buffered']
    #allocation6 [shape = 's32[1]{0}', space=sflag, size = 0x4, scoped, tag = 'scoped memory for tpu_custom_call.1']
    #allocation7 [shape = 'u8[36864]{0}', space=vmem, size = 0x9000, scoped, tag = 'input window, operand 2, single buffered']
    #allocation8 [shape = 'u8[24576]{0}', space=vmem, size = 0x6000, scoped, tag = 'input window, operand 3, single buffered']
    #allocation9 [shape = 's32[1]{0}', space=sflag, size = 0x4, scoped, tag = 'scoped memory for tpu_custom_call.1']
    #allocation10 [shape = 'u8[4096]{0}', space=vmem, size = 0x1000, scoped, tag = 'output window, operand 0, single buffered']
    %9 = vsyncpa [#allocation3], 0
    %10 = vsyncpa [#allocation6], 0
    %11 = vsyncpa [#allocation9], 0
    %12 = vsyncpa [#allocation4], 0
    // Predicated region
    $region2: #{tpu_custom_call.1} parent=1 // pred_check
      _
    $region3: #{tpu_custom_call.1} parent=1 // pred_check_branch
      %14 = sbr.rel (0) target = $region5
    $region4: #{tpu_custom_call.1} parent=1 // pred_region
      %16 = vsyncadd [#allocation3], 0
      %s18 = sshll.u32 %s0, 4
      %s19 = int_to_ptr.hbm [resolvable:$true] %s18
      %s20 = sshll.u32 [#allocation2], 4
      %s21 = int_to_ptr.vmem [resolvable:$true] %s20
      %23 = dma.hbm_to_vmem [thread:$0]  %s19, 128, %s21, [#allocation3]
    $region5: #{tpu_custom_call.1} parent=1 // pred_fallthru
      _
    // Predicated region
    $region6: #{tpu_custom_call.1} parent=1 // pred_check
      _
    $region7: #{tpu_custom_call.1} parent=1 // pred_check_branch
      %25 = sbr.rel (0) target = $region9
    $region8: #{tpu_custom_call.1} parent=1 // pred_region
      %27 = vsyncadd [#allocation6], 0
      %s28 = sshll.u32 %s1, 4
      %s29 = int_to_ptr.hbm [resolvable:$true] %s28
      %s30 = sshll.u32 [#allocation5], 4
      %s31 = int_to_ptr.vmem [resolvable:$true] %s30
      %36 = dma.hbm_to_vmem [thread:$0]  %s29, 768, %s31, [#allocation6], 128, 128, 8
    $region9: #{tpu_custom_call.1} parent=1 // pred_fallthru
      _
    // Predicated region
    $region10: #{tpu_custom_call.1} parent=1 // pred_check
      _
    $region11: #{tpu_custom_call.1} parent=1 // pred_check_branch
      %38 = sbr.rel (0) target = $region13
    $region12: #{tpu_custom_call.1} parent=1 // pred_region
      %40 = vsyncadd [#allocation6], 0
      %s41 = sshll.u32 %s2, 4
      %s42 = int_to_ptr.hbm [resolvable:$true] %s41
      %s43 = sshll.u32 [#allocation7], 4
      %s44 = int_to_ptr.vmem [resolvable:$true] %s43
      %49 = dma.hbm_to_vmem [thread:$0]  %s42, 1152, %s44, [#allocation6], 128, 128, 8
    $region13: #{tpu_custom_call.1} parent=1 // pred_fallthru
      _
    // Predicated region
    $region14: #{tpu_custom_call.1} parent=1 // pred_check
      _
    $region15: #{tpu_custom_call.1} parent=1 // pred_check_branch
      %51 = sbr.rel (0) target = $region17
    $region16: #{tpu_custom_call.1} parent=1 // pred_region
      %53 = vsyncadd [#allocation9], 0
      %s54 = sshll.u32 %s3, 4
      %s55 = int_to_ptr.hbm [resolvable:$true] %s54
      %s56 = sshll.u32 [#allocation8], 4
      %s57 = int_to_ptr.vmem [resolvable:$true] %s56
      %62 = dma.hbm_to_vmem [thread:$0]  %s55, 768, %s57, [#allocation9], 128, 128, 8
    $region17: #{tpu_custom_call.1} parent=1 // pred_fallthru
      _
    // Predicated region
    $region18: #{tpu_custom_call.1} parent=1 // pred_check
      _
    $region19: #{tpu_custom_call.1} parent=1 // pred_check_branch
      %64 = sbr.rel (0) target = $region21
    $region20: #{tpu_custom_call.1} parent=1 // pred_region
      %66 = dma.done [#allocation3], 128
    $region21: #{tpu_custom_call.1} parent=1 // pred_fallthru
      _
    // Predicated region
    $region22: #{tpu_custom_call.1} parent=1 // pred_check
      _
    $region23: #{tpu_custom_call.1} parent=1 // pred_check_branch
      %68 = sbr.rel (0) target = $region25
    $region24: #{tpu_custom_call.1} parent=1 // pred_region
      %70 = dma.done [#allocation6], 768
    $region25: #{tpu_custom_call.1} parent=1 // pred_fallthru
      _
    // Predicated region
    $region26: #{tpu_custom_call.1} parent=1 // pred_check
      _
    $region27: #{tpu_custom_call.1} parent=1 // pred_check_branch
      %72 = sbr.rel (0) target = $region29
    $region28: #{tpu_custom_call.1} parent=1 // pred_region
      %74 = dma.done [#allocation6], 1152
    $region29: #{tpu_custom_call.1} parent=1 // pred_fallthru
      _
    // Predicated region
    $region30: #{tpu_custom_call.1} parent=1 // pred_check
      _
    $region31: #{tpu_custom_call.1} parent=1 // pred_check_branch
      %76 = sbr.rel (0) target = $region33
    $region32: #{tpu_custom_call.1} parent=1 // pred_region
      %78 = dma.done [#allocation9], 768
    $region33: #{tpu_custom_call.1} parent=1 // pred_fallthru
      _
    %v79 = vld [vmem:[#allocation2] sm:$0xff]
    %v80 = vld [vmem:[#allocation5] sm:$0xff]
    %v81 = vld [vmem:[#allocation5 + $0x8] sm:$0xff]
    %v82 = vld [vmem:[#allocation5 + $0x10] sm:$0xff]
    %v83 = vld [vmem:[#allocation5 + $0x18] sm:$0xff]
    %v84 = vld [vmem:[#allocation5 + $0x20] sm:$0xff]
    %v85 = vld [vmem:[#allocation5 + $0x28] sm:$0x1]
    %vm86 = vcmask 334848
    %v88 = vsel %vm86, %v79, 0
    %vm90 = vcmask 1040384
    %v92 = vsel %vm90, %v85, 0
    %94 = vmatpush.msra.mxu0 0.0
    %95 = vmatpush.msra.mxu0 0.0
    %96 = vmatpush.msra.mxu0 0.0
    %97 = vmatpush.msra.mxu0 0.0
    %98 = vmatpush.msra.mxu0 0.0
    %99 = vmatpush.msra.mxu0 0.0
    %100 = vmatpush.msra.mxu0 0.0
    %101 = vmatpush.msra.mxu0 0.0
    %102 = vmatpush.msra.mxu0 0.0
    %103 = vmatpush.msra.mxu0 0.0
    %104 = vmatpush.msra.mxu0 %v92
    %105 = vmatpush.msra.mxu0 %v84
    %106 = vmatpush.msra.mxu0 %v83
    %107 = vmatpush.msra.mxu0 %v82
    %108 = vmatpush.msra.mxu0 %v81
    %109 = vmatpush.msra.mxu0 %v80
    %110 = vmatmul.f32.gmra.mxu0 %v88
    %v111 = vpop.f32.mrf.mxu0
    %v112 = vadd.f32 0.0, %v111
    %113 = vdwg.mxu0
    %v114 = vmax.f32 %v112, 0.0
    %v115 = vld [vmem:[#allocation7] sm:$0xff]
    %v116 = vld [vmem:[#allocation7 + $0x8] sm:$0xff]
    %v117 = vld [vmem:[#allocation7 + $0x10] sm:$0xff]
    %v118 = vld [vmem:[#allocation7 + $0x18] sm:$0xff]
    %v119 = vld [vmem:[#allocation7 + $0x20] sm:$0xff]
    %v120 = vld [vmem:[#allocation7 + $0x28] sm:$0xff]
    %v121 = vld [vmem:[#allocation7 + $0x30] sm:$0xff]
    %v122 = vld [vmem:[#allocation7 + $0x38] sm:$0xff]
    %v123 = vld [vmem:[#allocation7 + $0x40] sm:$0x1]
    %vm124 = vcmask 531456
    %v126 = vsel %vm124, %v114, 0
    %v129 = vsel %vm90, %v123, 0
    %131 = vmatpush.msra.mxu0 0.0
    %132 = vmatpush.msra.mxu0 0.0
    %133 = vmatpush.msra.mxu0 0.0
    %134 = vmatpush.msra.mxu0 0.0
    %135 = vmatpush.msra.mxu0 0.0
    %136 = vmatpush.msra.mxu0 0.0
    %137 = vmatpush.msra.mxu0 0.0
    %138 = vmatpush.msra.mxu0 %v129
    %139 = vmatpush.msra.mxu0 %v122
    %140 = vmatpush.msra.mxu0 %v121
    %141 = vmatpush.msra.mxu0 %v120
    %142 = vmatpush.msra.mxu0 %v119
    %143 = vmatpush.msra.mxu0 %v118
    %144 = vmatpush.msra.mxu0 %v117
    %145 = vmatpush.msra.mxu0 %v116
    %146 = vmatpush.msra.mxu0 %v115
    %147 = vmatmul.f32.gmra.mxu0 %v126
    %v148 = vpop.f32.mrf.mxu0
    %v149 = vadd.f32 0.0, %v148
    %150 = vdwg.mxu0
    %v151 = vlaneseq
    %v152 = vand.u32 %v151, 127
    %vm153 = vcmp.ge.s32.totalorder %v152, 2
    %v154 = vtanh.pop %v149
    %v155 = vsel %vm153, 1, 0
    %vm156 = vcmp.eq.s32.totalorder %v155, 1
    %v157 = vsel %vm156, %v154, %v149
    %v158 = vld [vmem:[#allocation8] sm:$0xff]
    %v159 = vld [vmem:[#allocation8 + $0x8] sm:$0xff]
    %v160 = vld [vmem:[#allocation8 + $0x10] sm:$0xff]
    %v161 = vld [vmem:[#allocation8 + $0x18] sm:$0xff]
    %v162 = vld [vmem:[#allocation8 + $0x20] sm:$0xff]
    %v163 = vld [vmem:[#allocation8 + $0x28] sm:$0x1]
    %v165 = vsel %vm90, %v163, 0
    %167 = vmatpush.msra.mxu0 0.0
    %168 = vmatpush.msra.mxu0 0.0
    %169 = vmatpush.msra.mxu0 0.0
    %170 = vmatpush.msra.mxu0 0.0
    %171 = vmatpush.msra.mxu0 0.0
    %172 = vmatpush.msra.mxu0 0.0
    %173 = vmatpush.msra.mxu0 0.0
    %174 = vmatpush.msra.mxu0 0.0
    %175 = vmatpush.msra.mxu0 0.0
    %176 = vmatpush.msra.mxu0 0.0
    %177 = vmatpush.msra.mxu0 %v165
    %178 = vmatpush.msra.mxu0 %v162
    %179 = vmatpush.msra.mxu0 %v161
    %180 = vmatpush.msra.mxu0 %v160
    %181 = vmatpush.msra.mxu0 %v159
    %182 = vmatpush.msra.mxu0 %v158
    %183 = vmatmul.f32.gmra.mxu0 %v88
    %v184 = vpop.f32.mrf.mxu0
    %v185 = vadd.f32 0.0, %v184
    %186 = vdwg.mxu0
    %v187 = vmul.f32 %v79, %v79
    %189 = vrot.lane.b32.xlu0 %v187, 96
    %v190 = vpop.permute.xlu0 %189
    %vm192 = vcmask 64512
    %v193 = vsel %vm192, %v190, 0.0
    %194 = vadd.xlane.f32.xlu0 %v193
    %v195 = vpop.xlane.xlu0 %194
    %v196 = vmul.f32 %v195, -0.5
    %v197 = vadd.f32 %v157, %v185
    %vm198 = vcmp.eq.s32.totalorder %v152, 1
    %v199 = vsel %vm198, 1, 0
    %vm200 = vcmp.eq.s32.totalorder %v199, 1
    %v201 = vsel %vm200, %v196, 0.0
    %v202 = vadd.f32 %v197, %v201
    %203 = vst [vmem:[#allocation10] sm:$0xff] %v202
    // Predicated region
    $region34: #{tpu_custom_call.1} parent=1 // pred_check
      _
    $region35: #{tpu_custom_call.1} parent=1 // pred_check_branch
      %205 = sbr.rel (0) target = $region37
    $region36: #{tpu_custom_call.1} parent=1 // pred_region
      %207 = vsyncadd [#allocation4], 0
      %s209 = sshll.u32 [#allocation10], 4
      %s210 = int_to_ptr.vmem [resolvable:$true] %s209
      %s211 = sshll.u32 %s4, 4
      %s212 = int_to_ptr.hbm [resolvable:$true] %s211
      %214 = dma.vmem_to_hbm [thread:$0]  %s210, 128, %s212, [#allocation4]
    $region37: #{tpu_custom_call.1} parent=1 // pred_fallthru
      _
    // Predicated region
    $region38: #{tpu_custom_call.1} parent=1 // pred_check
      _
    $region39: #{tpu_custom_call.1} parent=1 // pred_check_branch
      %216 = sbr.rel (0) target = $region41
    $region40: #{tpu_custom_call.1} parent=1 // pred_region
      %218 = dma.done [#allocation4], 128
    $region41: #{tpu_custom_call.1} parent=1 // pred_fallthru
      _
    %219 = vsyncpa [#allocation3], 1
    %220 = vsyncpa [#allocation6], 1
    %221 = vsyncpa [#allocation9], 1
    %222 = vsyncpa [#allocation4], 1

</llo_original>
